<compile_context>
chip_gen: v6e
topology: v6e:2x2x1
jax: 0.10.0
libtpu: 0.0.40
codegen_flags: <defaults>
</compile_context>

<pallas_src>
import jax
import jax.numpy as jnp
from jax.experimental import pallas as pl
from jax.experimental.pallas import tpu as pltpu

_H1 = 128
_H2 = 256
_LANE = 128


def _round_up(n, k):
    return ((n + k - 1) // k) * k


def _mlp_kernel(x_ref, w1_ref, b1_ref, w2_ref, b2_ref, w3_ref, b3_ref, o_ref):
    # Layer 1 on the VPU: (TB,1) * (1,128) broadcast + bias + ReLU (f32).
    h1 = jnp.maximum(x_ref[...] * w1_ref[...] + b1_ref[...], 0.0)
    # Layer 2: bf16 MXU matmul (128 -> 256), f32 accumulate, bias/ReLU on VPU.
    h2 = jnp.dot(h1.astype(jnp.bfloat16), w2_ref[...],
                 preferred_element_type=jnp.float32)
    h2 = jnp.maximum(h2 + b2_ref[...], 0.0)
    # Layer 3: bf16 MXU matmul into a lane-dense 128-wide padded output slab.
    out = jnp.dot(h2.astype(jnp.bfloat16), w3_ref[...],
                  preferred_element_type=jnp.float32)
    o_ref[...] = out + b3_ref[...]


def init_params(m, key):
    """Deterministic init mimicking nn.Linear default U[-1/sqrt(fan_in), 1/sqrt(fan_in)].
    Weights stored transposed as (in_features, out_features)."""
    dims = [(1, _H1), (_H1, _H2), (_H2, m + 1)]
    params = {}
    keys = jax.random.split(key, 2 * len(dims))
    for i, (fan_in, fan_out) in enumerate(dims):
        bound = 1.0 / (fan_in ** 0.5)
        params[f"w{i+1}"] = jax.random.uniform(
            keys[2 * i], (fan_in, fan_out), minval=-bound, maxval=bound,
            dtype=jnp.float32)
        params[f"b{i+1}"] = jax.random.uniform(
            keys[2 * i + 1], (1, fan_out), minval=-bound, maxval=bound,
            dtype=jnp.float32)
    return params


def prepare_params(params, m):
    """Cast layer-2/3 weights to bf16 and zero-pad layer 3 to 128 output lanes."""
    out_pad = _round_up(m + 1, _LANE)
    w3p = jnp.zeros((_H2, out_pad), jnp.float32).at[:, : m + 1].set(params["w3"])
    b3p = jnp.zeros((1, out_pad), jnp.float32).at[:, : m + 1].set(params["b3"])
    return dict(
        w1=params["w1"].astype(jnp.float32),
        b1=params["b1"].astype(jnp.float32),
        w2=params["w2"].astype(jnp.bfloat16),
        b2=params["b2"].astype(jnp.float32),
        w3=w3p.astype(jnp.bfloat16),
        b3=b3p,
    )


def average_two_thinning_forward(x, prepared, m, *, tb=2048):
    """x: (B, 1) float. prepared: output of prepare_params. Returns (B, m+1) f32."""
    w1, b1 = prepared["w1"], prepared["b1"]
    w2, b2 = prepared["w2"], prepared["b2"]
    w3, b3 = prepared["w3"], prepared["b3"]
    out_pad = w3.shape[1]

    B = x.shape[0]
    # Batch tile: multiple of 8 sublanes, capped at `tb` (out tile at tb=2048 is
    # 1 MiB f32, double-buffered -> comfortably inside every chip's VMEM).
    # Tiny batches collapse to a single tile.
    tb_eff = min(tb, _round_up(B, 8))
    b_pad = _round_up(B, tb_eff)
    x = x.astype(jnp.float32)
    if b_pad != B:
        x = jnp.pad(x, ((0, b_pad - B), (0, 0)))

    grid = (b_pad // tb_eff,)

    def const(shape):
        # Weights/biases: same block every grid step -> stay VMEM-resident.
        return pl.BlockSpec(shape, lambda i: (0,) * len(shape))

    out_padded = pl.pallas_call(
        _mlp_kernel,
        out_shape=jax.ShapeDtypeStruct((b_pad, out_pad), jnp.float32),
        grid=grid,
        in_specs=[
            pl.BlockSpec((tb_eff, 1), lambda i: (i, 0)),
            const(w1.shape), const(b1.shape),
            const(w2.shape), const(b2.shape),
            const(w3.shape), const(b3.shape),
        ],
        out_specs=pl.BlockSpec((tb_eff, out_pad), lambda i: (i, 0)),
        compiler_params=pltpu.CompilerParams(
            dimension_semantics=("parallel",),
            vmem_limit_bytes=32 * 1024 * 1024,
        ),
    )(x, w1, b1, w2, b2, w3, b3)

    return out_padded[:B, : m + 1]


def reference_forward_f32(x, params):
    h1 = jnp.maximum(x @ params["w1"] + params["b1"], 0.0)
    h2 = jnp.maximum(h1 @ params["w2"] + params["b2"], 0.0)
    return h2 @ params["w3"] + params["b3"]


def reference_forward_mixed(x, params):
    # Same mixed precision as the kernel: bf16 at the MXU inputs, f32 elsewhere.
    h1 = jnp.maximum(x * params["w1"] + params["b1"], 0.0)
    h2 = jnp.dot(h1.astype(jnp.bfloat16), params["w2"].astype(jnp.bfloat16),
                 preferred_element_type=jnp.float32) + params["b2"]
    h2 = jnp.maximum(h2, 0.0)
    return jnp.dot(h2.astype(jnp.bfloat16), params["w3"].astype(jnp.bfloat16),
                   preferred_element_type=jnp.float32) + params["b3"]


if __name__ == "__main__":
    m = 8          # number of bins -> output dim m + 1 = 9

    key = jax.random.PRNGKey(0)
    k_params, k_x1, k_x2 = jax.random.split(key, 3)
    params = init_params(m, k_params)
    prepared = prepare_params(params, m)

    # Case 1: tiny batch (single tile, grid == 1).
    x1 = jax.random.uniform(k_x1, (8, 1), minval=0.0, maxval=float(m),
                            dtype=jnp.float32)
    out1 = jax.block_until_ready(average_two_thinning_forward(x1, prepared, m))
    assert out1.shape == (8, m + 1), out1.shape
    assert jnp.allclose(out1, reference_forward_mixed(x1, params),
                        atol=1e-2, rtol=1e-2), "mismatch vs mixed-precision reference"
    assert jnp.allclose(out1, reference_forward_f32(x1, params),
                        atol=0.5, rtol=0.5), "diverged from f32 reference"

    # Case 2: multiple batch tiles (exercises the grid / pipelined path).
    x2 = jax.random.uniform(k_x2, (24, 1), minval=0.0, maxval=float(m),
                            dtype=jnp.float32)
    out2 = jax.block_until_ready(
        average_two_thinning_forward(x2, prepared, m, tb=8))
    assert out2.shape == (24, m + 1), out2.shape
    assert jnp.allclose(out2, reference_forward_mixed(x2, params),
                        atol=1e-2, rtol=1e-2), "mismatch vs mixed-precision reference"

    print("KERNEL_OK")
</pallas_src>

<mosaic_0001>
module attributes {stable_mosaic.version = 11 : i64} {
  func.func @_mlp_kernel(%arg0: i32, %arg1: memref<8x1xf32, #tpu.memory_space<vmem>>, %arg2: memref<1x128xf32, #tpu.memory_space<vmem>>, %arg3: memref<1x128xf32, #tpu.memory_space<vmem>>, %arg4: memref<128x256xbf16, #tpu.memory_space<vmem>>, %arg5: memref<1x256xf32, #tpu.memory_space<vmem>>, %arg6: memref<256x128xbf16, #tpu.memory_space<vmem>>, %arg7: memref<1x128xf32, #tpu.memory_space<vmem>>, %arg8: memref<8x128xf32, #tpu.memory_space<vmem>>) attributes {dimension_semantics = [#tpu.dimension_semantics<parallel>], iteration_bounds = array<i64: 1>, scalar_prefetch = 0 : i64, scratch_operands = 0 : i64, tpu.core_type = #tpu.core_type<tc>, window_params = [{transform_indices = @transform_0, window_bounds = array<i64: 8, 1>}, {pipeline_mode = #tpu.pipeline_mode<synchronous>, transform_indices = @transform_1, window_bounds = array<i64: 1, 128>}, {pipeline_mode = #tpu.pipeline_mode<synchronous>, transform_indices = @transform_2, window_bounds = array<i64: 1, 128>}, {pipeline_mode = #tpu.pipeline_mode<synchronous>, transform_indices = @transform_3, window_bounds = array<i64: 128, 256>}, {pipeline_mode = #tpu.pipeline_mode<synchronous>, transform_indices = @transform_4, window_bounds = array<i64: 1, 256>}, {pipeline_mode = #tpu.pipeline_mode<synchronous>, transform_indices = @transform_5, window_bounds = array<i64: 256, 128>}, {pipeline_mode = #tpu.pipeline_mode<synchronous>, transform_indices = @transform_6, window_bounds = array<i64: 1, 128>}, {transform_indices = @transform_7, window_bounds = array<i64: 8, 128>}]} {
    %c0 = arith.constant 0 : index
    %c0_0 = arith.constant 0 : index
    %0 = vector.load %arg1[%c0, %c0_0] : memref<8x1xf32, #tpu.memory_space<vmem>>, vector<8x1xf32>
    %c0_1 = arith.constant 0 : index
    %c0_2 = arith.constant 0 : index
    %1 = vector.load %arg2[%c0_1, %c0_2] : memref<1x128xf32, #tpu.memory_space<vmem>>, vector<1x128xf32>
    %2 = vector.broadcast %0 : vector<8x1xf32> to vector<8x128xf32>
    %3 = vector.broadcast %1 : vector<1x128xf32> to vector<8x128xf32>
    %4 = arith.mulf %2, %3 : vector<8x128xf32>
    %c0_3 = arith.constant 0 : index
    %c0_4 = arith.constant 0 : index
    %5 = vector.load %arg3[%c0_3, %c0_4] : memref<1x128xf32, #tpu.memory_space<vmem>>, vector<1x128xf32>
    %6 = vector.broadcast %5 : vector<1x128xf32> to vector<8x128xf32>
    %7 = arith.addf %4, %6 : vector<8x128xf32>
    %cst = arith.constant 0.000000e+00 : f32
    %8 = vector.broadcast %cst : f32 to vector<8x128xf32>
    %9 = arith.maximumf %7, %8 : vector<8x128xf32>
    %10 = arith.truncf %9 : vector<8x128xf32> to vector<8x128xbf16>
    %c0_5 = arith.constant 0 : index
    %c0_6 = arith.constant 0 : index
    %11 = vector.load %arg4[%c0_5, %c0_6] : memref<128x256xbf16, #tpu.memory_space<vmem>>, vector<128x256xbf16>
    %cst_7 = arith.constant dense<0.000000e+00> : vector<8x256xf32>
    %12 = tpu.matmul %10, %11, %cst_7 {dimension_numbers = #tpu.dot_dimension_numbers<[1], [0], [0], [1], [0, 0, 1, 1], [], []>} : vector<8x128xbf16>, vector<128x256xbf16>, vector<8x256xf32> -> vector<8x256xf32>
    %c0_8 = arith.constant 0 : index
    %c0_9 = arith.constant 0 : index
    %13 = vector.load %arg5[%c0_8, %c0_9] : memref<1x256xf32, #tpu.memory_space<vmem>>, vector<1x256xf32>
    %14 = vector.broadcast %13 : vector<1x256xf32> to vector<8x256xf32>
    %15 = arith.addf %12, %14 : vector<8x256xf32>
    %cst_10 = arith.constant 0.000000e+00 : f32
    %16 = vector.broadcast %cst_10 : f32 to vector<8x256xf32>
    %17 = arith.maximumf %15, %16 : vector<8x256xf32>
    %18 = arith.truncf %17 : vector<8x256xf32> to vector<8x256xbf16>
    %c0_11 = arith.constant 0 : index
    %c0_12 = arith.constant 0 : index
    %19 = vector.load %arg6[%c0_11, %c0_12] : memref<256x128xbf16, #tpu.memory_space<vmem>>, vector<256x128xbf16>
    %cst_13 = arith.constant dense<0.000000e+00> : vector<8x128xf32>
    %20 = tpu.matmul %18, %19, %cst_13 {dimension_numbers = #tpu.dot_dimension_numbers<[1], [0], [0], [1], [0, 0, 1, 1], [], []>} : vector<8x256xbf16>, vector<256x128xbf16>, vector<8x128xf32> -> vector<8x128xf32>
    %c0_14 = arith.constant 0 : index
    %c0_15 = arith.constant 0 : index
    %21 = vector.load %arg7[%c0_14, %c0_15] : memref<1x128xf32, #tpu.memory_space<vmem>>, vector<1x128xf32>
    %22 = vector.broadcast %21 : vector<1x128xf32> to vector<8x128xf32>
    %23 = arith.addf %20, %22 : vector<8x128xf32>
    %c0_16 = arith.constant 0 : index
    %c0_17 = arith.constant 0 : index
    %24 = vector.load %arg8[%c0_16, %c0_17] : memref<8x128xf32, #tpu.memory_space<vmem>>, vector<8x128xf32>
    tpu.vector_store %arg8[%c0_16, %c0_17], %23 {strides = array<i32>} : memref<8x128xf32, #tpu.memory_space<vmem>>, vector<8x128xf32>,
    return
  }
  func.func @transform_0(%arg0: i32) -> (i32, i32) {
    %c0_i32 = arith.constant 0 : i32
    %c0_i32_0 = arith.constant 0 : i32
    return %arg0, %c0_i32 : i32, i32
  }
  func.func @transform_1(%arg0: i32) -> (i32, i32) {
    %c0_i32 = arith.constant 0 : i32
    %c0_i32_0 = arith.constant 0 : i32
    %c0_i32_1 = arith.constant 0 : i32
    return %c0_i32, %c0_i32_0 : i32, i32
  }
  func.func @transform_2(%arg0: i32) -> (i32, i32) {
    %c0_i32 = arith.constant 0 : i32
    %c0_i32_0 = arith.constant 0 : i32
    %c0_i32_1 = arith.constant 0 : i32
    return %c0_i32, %c0_i32_0 : i32, i32
  }
  func.func @transform_3(%arg0: i32) -> (i32, i32) {
    %c0_i32 = arith.constant 0 : i32
    %c0_i32_0 = arith.constant 0 : i32
    %c0_i32_1 = arith.constant 0 : i32
    return %c0_i32, %c0_i32_0 : i32, i32
  }
  func.func @transform_4(%arg0: i32) -> (i32, i32) {
    %c0_i32 = arith.constant 0 : i32
    %c0_i32_0 = arith.constant 0 : i32
    %c0_i32_1 = arith.constant 0 : i32
    return %c0_i32, %c0_i32_0 : i32, i32
  }
  func.func @transform_5(%arg0: i32) -> (i32, i32) {
    %c0_i32 = arith.constant 0 : i32
    %c0_i32_0 = arith.constant 0 : i32
    %c0_i32_1 = arith.constant 0 : i32
    return %c0_i32, %c0_i32_0 : i32, i32
  }
  func.func @transform_6(%arg0: i32) -> (i32, i32) {
    %c0_i32 = arith.constant 0 : i32
    %c0_i32_0 = arith.constant 0 : i32
    %c0_i32_1 = arith.constant 0 : i32
    return %c0_i32, %c0_i32_0 : i32, i32
  }
  func.func @transform_7(%arg0: i32) -> (i32, i32) {
    %c0_i32 = arith.constant 0 : i32
    %c0_i32_0 = arith.constant 0 : i32
    return %arg0, %c0_i32 : i32, i32
  }
}

</mosaic_0001>

<llo_original>
// kernel: tpu_custom_call.1
$region0: #{tpu_custom_call.1}
  #allocation0 [shape = 'u32[]', space=smem, size = 0x4, offset = 0x4, fixed_abs, tag = 'smem constant byte address 0x4 - core index']
  #allocation1 [shape = 'u32[144,128]{1,0:T(1,128)}', space=vmem, size = 0x12000, scoped, tag = 'internal scratch']
  %s0 = inlined_call_operand.vmem [shape: f32[8,1], index: 0, kind: input, shape index: {}]
  %s1 = inlined_call_operand.vmem [shape: f32[1,128], index: 1, kind: input, shape index: {}]
  %s2 = inlined_call_operand.vmem [shape: f32[1,128], index: 2, kind: input, shape index: {}]
  %s3 = inlined_call_operand.hbm [shape: bf16[128,256], index: 3, kind: input, shape index: {}]
  %s4 = inlined_call_operand.vmem [shape: f32[1,256], index: 4, kind: input, shape index: {}]
  %s5 = inlined_call_operand.hbm [shape: bf16[256,128], index: 5, kind: input, shape index: {}]
  %s6 = inlined_call_operand.vmem [shape: f32[1,128], index: 6, kind: input, shape index: {}]
  %s7 = inlined_call_operand.hbm [shape: f32[8,128], index: 7, kind: output, shape index: {}]
  %s8 = sld [smem:[#allocation0]]
  $region46: #{tpu_custom_call.1} parent=0
    _
  %s10 = ssub.s32 1, %s8
  %s11 = scalar_select 0, %s10, %s8
  $region1: #{tpu_custom_call.1} parent=0
    #allocation2 [shape = 'u8[65536]{0}', space=vmem, size = 0x10000, scoped, tag = 'input window, operand 3, single buffered']
    #allocation3 [shape = 's32[1]{0}', space=sflag, size = 0x4, scoped, tag = 'scoped memory for tpu_custom_call.1']
    #allocation4 [shape = 's32[1]{0}', space=sflag, size = 0x4, scoped, tag = 'scoped memory for tpu_custom_call.1']
    #allocation5 [shape = 'u8[65536]{0}', space=vmem, size = 0x10000, scoped, tag = 'input window, operand 5, single buffered']
    #allocation6 [shape = 's32[1]{0}', space=sflag, size = 0x4, scoped, tag = 'scoped memory for tpu_custom_call.1']
    #allocation7 [shape = 'u8[4096]{0}', space=vmem, size = 0x1000, scoped, tag = 'output window, operand 0, single buffered']
    %12 = vsyncpa [#allocation3], 0
    %13 = vsyncpa [#allocation6], 0
    %14 = vsyncpa [#allocation4], 0
    // Predicated region
    $region2: #{tpu_custom_call.1} parent=1 // pred_check
      _
    $region3: #{tpu_custom_call.1} parent=1 // pred_check_branch
      %16 = sbr.rel (0) target = $region5
    $region4: #{tpu_custom_call.1} parent=1 // pred_region
      _
    $region5: #{tpu_custom_call.1} parent=1 // pred_fallthru
      _
    // Predicated region
    $region6: #{tpu_custom_call.1} parent=1 // pred_check
      _
    $region7: #{tpu_custom_call.1} parent=1 // pred_check_branch
      %18 = sbr.rel (0) target = $region9
    $region8: #{tpu_custom_call.1} parent=1 // pred_region
      _
    $region9: #{tpu_custom_call.1} parent=1 // pred_fallthru
      _
    // Predicated region
    $region10: #{tpu_custom_call.1} parent=1 // pred_check
      _
    $region11: #{tpu_custom_call.1} parent=1 // pred_check_branch
      %20 = sbr.rel (0) target = $region13
    $region12: #{tpu_custom_call.1} parent=1 // pred_region
      _
    $region13: #{tpu_custom_call.1} parent=1 // pred_fallthru
      _
    // Predicated region
    $region14: #{tpu_custom_call.1} parent=1 // pred_check
      _
    $region15: #{tpu_custom_call.1} parent=1 // pred_check_branch
      %22 = sbr.rel (0) target = $region17
    $region16: #{tpu_custom_call.1} parent=1 // pred_region
      %s24 = ssub.s32 2048, 2048
      %25 = vsyncadd [#allocation3], %s24
      %s26 = sshll.u32 [#allocation2], 4
      %s27 = int_to_ptr.vmem [resolvable:$true] %s26
      %32 = dma.hbm_to_vmem [thread:$0]  %s3, 2048, %s27, [#allocation3], 128, 128, 8
    $region17: #{tpu_custom_call.1} parent=1 // pred_fallthru
      _
    // Predicated region
    $region18: #{tpu_custom_call.1} parent=1 // pred_check
      _
    $region19: #{tpu_custom_call.1} parent=1 // pred_check_branch
      %34 = sbr.rel (0) target = $region21
    $region20: #{tpu_custom_call.1} parent=1 // pred_region
      _
    $region21: #{tpu_custom_call.1} parent=1 // pred_fallthru
      _
    // Predicated region
    $region22: #{tpu_custom_call.1} parent=1 // pred_check
      _
    $region23: #{tpu_custom_call.1} parent=1 // pred_check_branch
      %36 = sbr.rel (0) target = $region25
    $region24: #{tpu_custom_call.1} parent=1 // pred_region
      %s38 = ssub.s32 2048, 2048
      %39 = vsyncadd [#allocation6], %s38
      %s40 = sshll.u32 [#allocation5], 4
      %s41 = int_to_ptr.vmem [resolvable:$true] %s40
      %46 = dma.hbm_to_vmem [thread:$0]  %s5, 2048, %s41, [#allocation6], 64, 64, 4
    $region25: #{tpu_custom_call.1} parent=1 // pred_fallthru
      _
    // Predicated region
    $region26: #{tpu_custom_call.1} parent=1 // pred_check
      _
    $region27: #{tpu_custom_call.1} parent=1 // pred_check_branch
      %48 = sbr.rel (0) target = $region29
    $region28: #{tpu_custom_call.1} parent=1 // pred_region
      _
    $region29: #{tpu_custom_call.1} parent=1 // pred_fallthru
      _
    // Predicated region
    $region30: #{tpu_custom_call.1} parent=1 // pred_check
      _
    $region31: #{tpu_custom_call.1} parent=1 // pred_check_branch
      %50 = sbr.rel (0) target = $region33
    $region32: #{tpu_custom_call.1} parent=1 // pred_region
      %51 = dma.done [#allocation3], 2048
    $region33: #{tpu_custom_call.1} parent=1 // pred_fallthru
      _
    // Predicated region
    $region34: #{tpu_custom_call.1} parent=1 // pred_check
      _
    $region35: #{tpu_custom_call.1} parent=1 // pred_check_branch
      %53 = sbr.rel (0) target = $region37
    $region36: #{tpu_custom_call.1} parent=1 // pred_region
      %54 = dma.done [#allocation6], 2048
    $region37: #{tpu_custom_call.1} parent=1 // pred_fallthru
      _
    %v56 = vld [vmem:[%s0] sm:$0xff]
    %v57 = vld [vmem:[%s1] sm:$0x1]
    %59 = vset.pattern.permute.xlu0 0
    %60 = vperm.xlu0 %59, %v56
    %v61 = vpop.permute.xlu0 %60
    %v64 = vlaneseq
    %v65 = vshrl.u32 %v64, 7
    %v66 = vsub.s32 0, %v65
    %v67 = vrot.slane %v57, %v66
    %v69 = vmul.f32 %v61, %v67
    %v70 = vld [vmem:[%s2] sm:$0x1]
    %v72 = vlaneseq
    %v73 = vshrl.u32 %v72, 7
    %v74 = vsub.s32 0, %v73
    %v75 = vrot.slane %v70, %v74
    %v77 = vadd.f32 %v69, %v75
    %v78 = vmax.f32 %v77, 0.0
    %v79 = vpack.c.bf16 %v78, %v78
    %v80 = vld [vmem:[#allocation2] sm:$0xff]
    %v81 = vld [vmem:[#allocation2 + $0x8] sm:$0xff]
    %v82 = vld [vmem:[#allocation2 + $0x10] sm:$0xff]
    %v83 = vld [vmem:[#allocation2 + $0x18] sm:$0xff]
    %v84 = vld [vmem:[#allocation2 + $0x20] sm:$0xff]
    %v85 = vld [vmem:[#allocation2 + $0x28] sm:$0xff]
    %v86 = vld [vmem:[#allocation2 + $0x30] sm:$0xff]
    %v87 = vld [vmem:[#allocation2 + $0x38] sm:$0xff]
    %v88 = vld [vmem:[#allocation2 + $0x40] sm:$0xff]
    %v89 = vld [vmem:[#allocation2 + $0x48] sm:$0xff]
    %v90 = vld [vmem:[#allocation2 + $0x50] sm:$0xff]
    %v91 = vld [vmem:[#allocation2 + $0x58] sm:$0xff]
    %v92 = vld [vmem:[#allocation2 + $0x60] sm:$0xff]
    %v93 = vld [vmem:[#allocation2 + $0x68] sm:$0xff]
    %v94 = vld [vmem:[#allocation2 + $0x70] sm:$0xff]
    %v95 = vld [vmem:[#allocation2 + $0x78] sm:$0xff]
    %v96 = vld [vmem:[%s4] sm:$0x3]
    %v98 = vlaneseq
    %v99 = vshrl.u32 %v98, 7
    %v100 = vsub.s32 0, %v99
    %v101 = vrot.slane %v96, %v100
    %v102 = vlaneseq
    %v103 = vshrl.u32 %v102, 7
    %v104 = vsub.s32 1, %v103
    %v105 = vrot.slane %v96, %v104
    %v124 = vunpack.c.l.b16 %v80
    %v125 = vunpack.c.h.b16 %v80
    %v126 = vunpack.c.l.b16 %v81
    %v127 = vunpack.c.h.b16 %v81
    %v128 = vunpack.c.l.b16 %v82
    %v129 = vunpack.c.h.b16 %v82
    %v130 = vunpack.c.l.b16 %v83
    %v131 = vunpack.c.h.b16 %v83
    %v132 = vunpack.c.l.b16 %v84
    %v133 = vunpack.c.h.b16 %v84
    %v134 = vunpack.c.l.b16 %v85
    %v135 = vunpack.c.h.b16 %v85
    %v136 = vunpack.c.l.b16 %v86
    %v137 = vunpack.c.h.b16 %v86
    %v138 = vunpack.c.l.b16 %v87
    %v139 = vunpack.c.h.b16 %v87
    %v140 = vunpack.c.l.b16 %v88
    %v141 = vunpack.c.h.b16 %v88
    %v142 = vunpack.c.l.b16 %v89
    %v143 = vunpack.c.h.b16 %v89
    %v144 = vunpack.c.l.b16 %v90
    %v145 = vunpack.c.h.b16 %v90
    %v146 = vunpack.c.l.b16 %v91
    %v147 = vunpack.c.h.b16 %v91
    %v148 = vunpack.c.l.b16 %v92
    %v149 = vunpack.c.h.b16 %v92
    %v150 = vunpack.c.l.b16 %v93
    %v151 = vunpack.c.h.b16 %v93
    %v152 = vunpack.c.l.b16 %v94
    %v153 = vunpack.c.h.b16 %v94
    %v154 = vunpack.c.l.b16 %v95
    %v155 = vunpack.c.h.b16 %v95
    %v156 = vpack.c.b16 %v126, %v124
    %v157 = vpack.c.b16 %v127, %v125
    %v158 = vpack.c.b16 %v130, %v128
    %v159 = vpack.c.b16 %v131, %v129
    %v160 = vpack.c.b16 %v134, %v132
    %v161 = vpack.c.b16 %v135, %v133
    %v162 = vpack.c.b16 %v138, %v136
    %v163 = vpack.c.b16 %v139, %v137
    %v164 = vpack.c.b16 %v142, %v140
    %v165 = vpack.c.b16 %v143, %v141
    %v166 = vpack.c.b16 %v146, %v144
    %v167 = vpack.c.b16 %v147, %v145
    %v168 = vpack.c.b16 %v150, %v148
    %v169 = vpack.c.b16 %v151, %v149
    %v170 = vpack.c.b16 %v154, %v152
    %v171 = vpack.c.b16 %v155, %v153
    %188 = vmatprep.subr.bf16.mxu0 %v171
    %189 = vmatpush1.bf16.msra.mxu0 %v170
    %190 = vmatprep.subr.bf16.mxu0 %v169
    %191 = vmatpush1.bf16.msra.mxu0 %v168
    %192 = vmatprep.subr.bf16.mxu0 %v167
    %193 = vmatpush1.bf16.msra.mxu0 %v166
    %194 = vmatprep.subr.bf16.mxu0 %v165
    %195 = vmatpush1.bf16.msra.mxu0 %v164
    %196 = vmatprep.subr.bf16.mxu0 %v163
    %197 = vmatpush1.bf16.msra.mxu0 %v162
    %198 = vmatprep.subr.bf16.mxu0 %v161
    %199 = vmatpush1.bf16.msra.mxu0 %v160
    %200 = vmatprep.subr.bf16.mxu0 %v159
    %201 = vmatpush1.bf16.msra.mxu0 %v158
    %202 = vmatprep.subr.bf16.mxu0 %v157
    %203 = vmatpush1.bf16.msra.mxu0 %v156
    %204 = vmatprep.subr.bf16.mxu0 0
    %205 = vmatpush2.bf16.msra.mxu0 0
    %206 = vmatprep.subr.bf16.mxu0 0
    %207 = vmatpush2.bf16.msra.mxu0 0
    %208 = vmatprep.subr.bf16.mxu0 0
    %209 = vmatpush2.bf16.msra.mxu0 0
    %210 = vmatprep.subr.bf16.mxu0 0
    %211 = vmatpush2.bf16.msra.mxu0 0
    %212 = vmatprep.subr.bf16.mxu0 0
    %213 = vmatpush2.bf16.msra.mxu0 0
    %214 = vmatprep.subr.bf16.mxu0 0
    %215 = vmatpush2.bf16.msra.mxu0 0
    %216 = vmatprep.subr.bf16.mxu0 0
    %217 = vmatpush2.bf16.msra.mxu0 0
    %218 = vmatprep.subr.bf16.mxu0 0
    %219 = vmatpush2.bf16.msra.mxu0 0
    %220 = vmatprep.mubr.bf16.mxu0 0
    %221 = vmatmul.mubr.bf16.gmra.mxu0 %v79
    %v222 = vpop.f32.mrf.mxu0
    %v223 = vadd.f32 %v101, %v222
    %v224 = vpop.f32.mrf.mxu0
    %v225 = vadd.f32 %v105, %v224
    %v226 = vpop.f32.mrf.mxu0
    %v227 = vpop.f32.mrf.mxu0
    %228 = vdwg.mxu0
    %v229 = vmax.f32 %v223, 0.0
    %v230 = vmax.f32 %v225, 0.0
    %v231 = vpack.c.bf16 %v229, %v229
    %v232 = vpack.c.bf16 %v230, %v230
    %v233 = vld [vmem:[#allocation5] sm:$0xf]
    %v234 = vld [vmem:[#allocation5 + $0x4] sm:$0xf]
    %v235 = vld [vmem:[#allocation5 + $0x8] sm:$0xf]
    %v236 = vld [vmem:[#allocation5 + $0xc] sm:$0xf]
    %v237 = vld [vmem:[#allocation5 + $0x10] sm:$0xf]
    %v238 = vld [vmem:[#allocation5 + $0x14] sm:$0xf]
    %v239 = vld [vmem:[#allocation5 + $0x18] sm:$0xf]
    %v240 = vld [vmem:[#allocation5 + $0x1c] sm:$0xf]
    %v241 = vld [vmem:[#allocation5 + $0x20] sm:$0xf]
    %v242 = vld [vmem:[#allocation5 + $0x24] sm:$0xf]
    %v243 = vld [vmem:[#allocation5 + $0x28] sm:$0xf]
    %v244 = vld [vmem:[#allocation5 + $0x2c] sm:$0xf]
    %v245 = vld [vmem:[#allocation5 + $0x30] sm:$0xf]
    %v246 = vld [vmem:[#allocation5 + $0x34] sm:$0xf]
    %v247 = vld [vmem:[#allocation5 + $0x38] sm:$0xf]
    %v248 = vld [vmem:[#allocation5 + $0x3c] sm:$0xf]
    %v249 = vld [vmem:[#allocation5 + $0x40] sm:$0xf]
    %v250 = vld [vmem:[#allocation5 + $0x44] sm:$0xf]
    %v251 = vld [vmem:[#allocation5 + $0x48] sm:$0xf]
    %v252 = vld [vmem:[#allocation5 + $0x4c] sm:$0xf]
    %v253 = vld [vmem:[#allocation5 + $0x50] sm:$0xf]
    %v254 = vld [vmem:[#allocation5 + $0x54] sm:$0xf]
    %v255 = vld [vmem:[#allocation5 + $0x58] sm:$0xf]
    %v256 = vld [vmem:[#allocation5 + $0x5c] sm:$0xf]
    %v257 = vld [vmem:[#allocation5 + $0x60] sm:$0xf]
    %v258 = vld [vmem:[#allocation5 + $0x64] sm:$0xf]
    %v259 = vld [vmem:[#allocation5 + $0x68] sm:$0xf]
    %v260 = vld [vmem:[#allocation5 + $0x6c] sm:$0xf]
    %v261 = vld [vmem:[#allocation5 + $0x70] sm:$0xf]
    %v262 = vld [vmem:[#allocation5 + $0x74] sm:$0xf]
    %v263 = vld [vmem:[#allocation5 + $0x78] sm:$0xf]
    %v264 = vld [vmem:[#allocation5 + $0x7c] sm:$0xf]
    %v265 = vld [vmem:[%s6] sm:$0x1]
    %v267 = vlaneseq
    %v268 = vshrl.u32 %v267, 7
    %v269 = vsub.s32 0, %v268
    %v270 = vrot.slane %v265, %v269
    %v304 = vunpack.c.l.b16 %v233
    %v305 = vunpack.c.l.b16 %v234
    %v306 = vunpack.c.l.b16 %v235
    %v307 = vunpack.c.l.b16 %v236
    %v308 = vunpack.c.l.b16 %v237
    %v309 = vunpack.c.l.b16 %v238
    %v310 = vunpack.c.l.b16 %v239
    %v311 = vunpack.c.l.b16 %v240
    %v312 = vunpack.c.l.b16 %v241
    %v313 = vunpack.c.l.b16 %v242
    %v314 = vunpack.c.l.b16 %v243
    %v315 = vunpack.c.l.b16 %v244
    %v316 = vunpack.c.l.b16 %v245
    %v317 = vunpack.c.l.b16 %v246
    %v318 = vunpack.c.l.b16 %v247
    %v319 = vunpack.c.l.b16 %v248
    %v320 = vunpack.c.l.b16 %v249
    %v321 = vunpack.c.l.b16 %v250
    %v322 = vunpack.c.l.b16 %v251
    %v323 = vunpack.c.l.b16 %v252
    %v324 = vunpack.c.l.b16 %v253
    %v325 = vunpack.c.l.b16 %v254
    %v326 = vunpack.c.l.b16 %v255
    %v327 = vunpack.c.l.b16 %v256
    %v328 = vunpack.c.l.b16 %v257
    %v329 = vunpack.c.l.b16 %v258
    %v330 = vunpack.c.l.b16 %v259
    %v331 = vunpack.c.l.b16 %v260
    %v332 = vunpack.c.l.b16 %v261
    %v333 = vunpack.c.l.b16 %v262
    %v334 = vunpack.c.l.b16 %v263
    %v335 = vunpack.c.l.b16 %v264
    %v336 = vpack.c.b16 %v305, %v304
    %v337 = vpack.c.b16 %v307, %v306
    %v338 = vpack.c.b16 %v309, %v308
    %v339 = vpack.c.b16 %v311, %v310
    %v340 = vpack.c.b16 %v313, %v312
    %v341 = vpack.c.b16 %v315, %v314
    %v342 = vpack.c.b16 %v317, %v316
    %v343 = vpack.c.b16 %v319, %v318
    %v344 = vpack.c.b16 %v321, %v320
    %v345 = vpack.c.b16 %v323, %v322
    %v346 = vpack.c.b16 %v325, %v324
    %v347 = vpack.c.b16 %v327, %v326
    %v348 = vpack.c.b16 %v329, %v328
    %v349 = vpack.c.b16 %v331, %v330
    %v350 = vpack.c.b16 %v333, %v332
    %v351 = vpack.c.b16 %v335, %v334
    %368 = vmatprep.subr.bf16.mxu0 0
    %369 = vmatpush1.bf16.msra.mxu0 %v343
    %370 = vmatprep.subr.bf16.mxu0 0
    %371 = vmatpush1.bf16.msra.mxu0 %v342
    %372 = vmatprep.subr.bf16.mxu0 0
    %373 = vmatpush1.bf16.msra.mxu0 %v341
    %374 = vmatprep.subr.bf16.mxu0 0
    %375 = vmatpush1.bf16.msra.mxu0 %v340
    %376 = vmatprep.subr.bf16.mxu0 0
    %377 = vmatpush1.bf16.msra.mxu0 %v339
    %378 = vmatprep.subr.bf16.mxu0 0
    %379 = vmatpush1.bf16.msra.mxu0 %v338
    %380 = vmatprep.subr.bf16.mxu0 0
    %381 = vmatpush1.bf16.msra.mxu0 %v337
    %382 = vmatprep.subr.bf16.mxu0 0
    %383 = vmatpush1.bf16.msra.mxu0 %v336
    %384 = vmatprep.subr.bf16.mxu0 0
    %385 = vmatpush2.bf16.msra.mxu0 %v351
    %386 = vmatprep.subr.bf16.mxu0 0
    %387 = vmatpush2.bf16.msra.mxu0 %v350
    %388 = vmatprep.subr.bf16.mxu0 0
    %389 = vmatpush2.bf16.msra.mxu0 %v349
    %390 = vmatprep.subr.bf16.mxu0 0
    %391 = vmatpush2.bf16.msra.mxu0 %v348
    %392 = vmatprep.subr.bf16.mxu0 0
    %393 = vmatpush2.bf16.msra.mxu0 %v347
    %394 = vmatprep.subr.bf16.mxu0 0
    %395 = vmatpush2.bf16.msra.mxu0 %v346
    %396 = vmatprep.subr.bf16.mxu0 0
    %397 = vmatpush2.bf16.msra.mxu0 %v345
    %398 = vmatprep.subr.bf16.mxu0 0
    %399 = vmatpush2.bf16.msra.mxu0 %v344
    %400 = vmatprep.mubr.bf16.mxu0 %v232
    %401 = vmatmul.mubr.bf16.gmra.mxu0 %v231
    %v402 = vpop.f32.mrf.mxu0
    %v403 = vadd.f32 %v270, %v402
    %v404 = vpop.f32.mrf.mxu0
    %v405 = vpop.f32.mrf.mxu0
    %v406 = vpop.f32.mrf.mxu0
    %407 = vdwg.mxu0
    %408 = vst [vmem:[#allocation7] sm:$0xff] %v403
    // Predicated region
    $region38: #{tpu_custom_call.1} parent=1 // pred_check
      _
    $region39: #{tpu_custom_call.1} parent=1 // pred_check_branch
      %410 = sbr.rel (0) target = $region41
    $region40: #{tpu_custom_call.1} parent=1 // pred_region
      %s412 = ssub.s32 128, 128
      %413 = vsyncadd [#allocation4], %s412
      %s415 = sshll.u32 [#allocation7], 4
      %s416 = int_to_ptr.vmem [resolvable:$true] %s415
      %418 = dma.vmem_to_hbm [thread:$0]  %s416, 128, %s7, [#allocation4]
    $region41: #{tpu_custom_call.1} parent=1 // pred_fallthru
      _
    // Predicated region
    $region42: #{tpu_custom_call.1} parent=1 // pred_check
      _
    $region43: #{tpu_custom_call.1} parent=1 // pred_check_branch
      %420 = sbr.rel (0) target = $region45
    $region44: #{tpu_custom_call.1} parent=1 // pred_region
      %421 = dma.done [#allocation4], 128
    $region45: #{tpu_custom_call.1} parent=1 // pred_fallthru
      _
    %422 = vsyncpa [#allocation3], 1
    %423 = vsyncpa [#allocation6], 1
    %424 = vsyncpa [#allocation4], 1

</llo_original>
